<compile_context>
chip_gen: v7x
topology: tpu7x:2x2x1
jax: 0.10.0
libtpu: 0.0.40
codegen_flags: <defaults>
</compile_context>

<pallas_src>
import math

import jax
import jax.numpy as jnp
from jax.experimental import pallas as pl
from jax.experimental.pallas import tpu as pltpu

_MASK_ROWS = 8                      # sublane-full resident mask block
_FAST_PATH_BYTES = 512 << 10        # below this, plain XLA beats a Pallas launch


def _landmark_dropout_kernel(x_ref, mask_ref, o_ref):
    # x_ref / o_ref: (TILE_R, C)   mask_ref: (8, C) resident, values in {0, 1/(1-p)}.
    tr, c = x_ref.shape
    mr = mask_ref.shape[0]
    if tr >= mr and tr % mr == 0:
        # Sublane-full multiply: (tr//8, 8, C) * (1, 8, C).  The reshape splits the
        # sublane axis at a multiple of 8, so it is layout-preserving (no copy).
        x = x_ref[...].reshape(tr // mr, mr, c)
        o_ref[...] = (x * mask_ref[...][None, :, :]).reshape(tr, c)
    else:
        # Tiny / irregular tile: all mask rows are identical, broadcast row 0.
        o_ref[...] = x_ref[...] * mask_ref[0:1, :]


def _choose_tile_r(R, row_bytes):
    """Row-tile size: ~4 MiB blocks, multiple of 32, >= ~4 grid steps when non-trivial."""
    if R <= 32:
        return R                                        # full extent is always legal
    budget_rows = max(32, ((4 << 20) // row_bytes) // 32 * 32)   # ~4 MiB per block
    quarter_rows = max(32, ((-(-R // 4)) + 31) // 32 * 32)       # >= ~4 grid steps
    return min(budget_rows, quarter_rows)


def landmark_dropout(x, *, p=0.5, key=None, training=True, force_pallas=False):
    """Pallas implementation of LandmarkDropout.forward.

    x: (batch, frame, landmark) array; `landmark` must be even.
    """
    if p < 0 or p > 1:
        raise ValueError(f"dropout probability has to be between 0 and 1, but got {p}")
    if not training or p == 0.0:
        return x                        # identity (eval mode, or no dropout)
    if p == 1.0:
        return jnp.zeros_like(x)        # avoid 0 * inf = NaN; drop everything
    if key is None:
        raise ValueError("landmark_dropout requires a PRNG key in training mode")

    B, F, L = x.shape
    assert L % 2 == 0, "landmark dimension must be even"
    dtype = x.dtype
    itemsize = jnp.dtype(dtype).itemsize

    # --- mask: built once in plain JAX (L//2 scalars), scale folded in ------------
    half_mask = jax.random.bernoulli(key, 1.0 - p, (L // 2,))
    full_mask = jnp.concatenate([half_mask, half_mask]).astype(dtype)      # (L,)
    scale = jnp.asarray(1.0 / (1.0 - p), dtype)
    mask_scaled = full_mask * scale                                         # (L,)

    total = B * F * L

    # --- small-input fast path: dispatch overhead dominates, let XLA fuse it ------
    if (not force_pallas) and total * itemsize <= _FAST_PATH_BYTES:
        return x * mask_scaled[None, None, :]

    # --- lane-dense flattening (pad to a multiple of lcm(L, 128)) -----------------
    C = (L * 128) // math.gcd(L, 128)            # lcm(L, 128); multiple of both
    pad = (-total) % C                            # < C, keeps mask phase aligned
    x_flat = x.reshape(total)
    if pad:
        x_flat = jnp.pad(x_flat, (0, pad))
    R = (total + pad) // C
    x2 = x_flat.reshape(R, C)

    reps = C // L                                 # mask period is L along the flat axis
    mask_row = jnp.tile(mask_scaled, reps)                              # (C,)
    mask_block = jnp.broadcast_to(mask_row[None, :], (_MASK_ROWS, C))   # (8, C) resident

    # --- row tiling ----------------------------------------------------------------
    tile_r = _choose_tile_r(R, C * itemsize)
    grid_r = pl.cdiv(R, tile_r)

    cost = pl.CostEstimate(
        flops=R * C,
        transcendentals=0,
        bytes_accessed=2 * R * C * itemsize + _MASK_ROWS * C * itemsize,
    )

    out2 = pl.pallas_call(
        _landmark_dropout_kernel,
        out_shape=jax.ShapeDtypeStruct((R, C), dtype),
        grid=(grid_r,),
        in_specs=[
            pl.BlockSpec((tile_r, C), lambda i: (i, 0)),          # streamed row tiles
            pl.BlockSpec((_MASK_ROWS, C), lambda i: (0, 0)),      # mask resident across grid
        ],
        out_specs=pl.BlockSpec((tile_r, C), lambda i: (i, 0)),
        compiler_params=pltpu.CompilerParams(
            dimension_semantics=("parallel",),    # v7x: shard rows over both TCs
            vmem_limit_bytes=32 << 20,            # safe for 2x(4MiB in)+2x(4MiB out)+mask
        ),
        cost_estimate=cost,
    )(x2, mask_block)

    out_flat = out2.reshape(R * C)
    if pad:
        out_flat = out_flat[:total]
    return out_flat.reshape(B, F, L)


def landmark_dropout_ref(x, half_mask, p):
    """Pure-JAX reference mirroring the PyTorch forward."""
    full_mask = jnp.concatenate([half_mask, half_mask])          # (L,)
    return x * full_mask[None, None, :] * (1.0 / (1.0 - p))


if __name__ == "__main__":
    p = 0.5
    key = jax.random.PRNGKey(0)
    kx1, km1, kx2, km2, kx3, km3 = jax.random.split(key, 6)

    # Case 1: real LRNet landmark width (68 pts * 2 coords = 136) with a shape that
    # forces padding (total = 2040, C = lcm(136,128) = 2176).  Pallas path.
    B1, F1, L1 = 3, 5, 136
    x1 = jax.random.normal(kx1, (B1, F1, L1), dtype=jnp.float32)
    out1 = jax.block_until_ready(
        landmark_dropout(x1, p=p, key=km1, training=True, force_pallas=True))
    half1 = jax.random.bernoulli(km1, 1.0 - p, (L1 // 2,)).astype(x1.dtype)
    ref1 = landmark_dropout_ref(x1, half1, p)
    assert out1.shape == x1.shape and out1.dtype == x1.dtype
    assert jnp.allclose(out1, ref1, atol=1e-6, rtol=1e-6)

    # Case 2: larger row count -> multi-step grid + sublane-full mask path
    # (R = 256, C = 128, tile_r = 64, grid = 4).  Pallas path.
    B2, F2, L2 = 4, 128, 64
    x2 = jax.random.normal(kx2, (B2, F2, L2), dtype=jnp.float32)
    out2 = jax.block_until_ready(
        landmark_dropout(x2, p=p, key=km2, training=True, force_pallas=True))
    half2 = jax.random.bernoulli(km2, 1.0 - p, (L2 // 2,)).astype(x2.dtype)
    ref2 = landmark_dropout_ref(x2, half2, p)
    assert out2.shape == x2.shape and out2.dtype == x2.dtype
    assert jnp.allclose(out2, ref2, atol=1e-6, rtol=1e-6)

    # Case 3: tiny LRNet-like shape exercises the plain-JAX fast path.
    B3, F3, L3 = 2, 8, 32
    x3 = jax.random.normal(kx3, (B3, F3, L3), dtype=jnp.float32)
    out3 = jax.block_until_ready(landmark_dropout(x3, p=p, key=km3, training=True))
    half3 = jax.random.bernoulli(km3, 1.0 - p, (L3 // 2,)).astype(x3.dtype)
    ref3 = landmark_dropout_ref(x3, half3, p)
    assert out3.shape == x3.shape and out3.dtype == x3.dtype
    assert jnp.allclose(out3, ref3, atol=1e-6, rtol=1e-6)

    # Eval mode: identity.  p == 1: all zeros (no NaN).
    out_eval = landmark_dropout(x3, p=p, training=False)
    assert jnp.allclose(out_eval, x3)
    out_p1 = landmark_dropout(x3, p=1.0, key=km3, training=True)
    assert jnp.allclose(out_p1, jnp.zeros_like(x3))

    print("KERNEL_OK")
</pallas_src>

<mosaic_0001>
module attributes {stable_mosaic.version = 11 : i64} {
  func.func @_landmark_dropout_kernel(%arg0: i32, %arg1: memref<1x2176xf32, #tpu.memory_space<vmem>>, %arg2: memref<8x2176xf32, #tpu.memory_space<vmem>>, %arg3: memref<1x2176xf32, #tpu.memory_space<vmem>>) attributes {dimension_semantics = [#tpu.dimension_semantics<parallel>], iteration_bounds = array<i64: 1>, scalar_prefetch = 0 : i64, scratch_operands = 0 : i64, tpu.core_type = #tpu.core_type<tc>, window_params = [{transform_indices = @transform_0, window_bounds = array<i64: 1, 2176>}, {pipeline_mode = #tpu.pipeline_mode<synchronous>, transform_indices = @transform_1, window_bounds = array<i64: 8, 2176>}, {transform_indices = @transform_2, window_bounds = array<i64: 1, 2176>}]} {
    %c0 = arith.constant 0 : index
    %c0_0 = arith.constant 0 : index
    %0 = vector.load %arg1[%c0, %c0_0] : memref<1x2176xf32, #tpu.memory_space<vmem>>, vector<1x2176xf32>
    %c0_1 = arith.constant 0 : index
    %c0_2 = arith.constant 0 : index
    %1 = vector.load %arg2[%c0_1, %c0_2] : memref<8x2176xf32, #tpu.memory_space<vmem>>, vector<1x2176xf32>
    %2 = arith.mulf %0, %1 : vector<1x2176xf32>
    %c0_3 = arith.constant 0 : index
    %c0_4 = arith.constant 0 : index
    %3 = vector.load %arg3[%c0_3, %c0_4] : memref<1x2176xf32, #tpu.memory_space<vmem>>, vector<1x2176xf32>
    tpu.vector_store %arg3[%c0_3, %c0_4], %2 {strides = array<i32>} : memref<1x2176xf32, #tpu.memory_space<vmem>>, vector<1x2176xf32>,
    return
  }
  func.func @transform_0(%arg0: i32) -> (i32, i32) {
    %c0_i32 = arith.constant 0 : i32
    %c0_i32_0 = arith.constant 0 : i32
    return %arg0, %c0_i32 : i32, i32
  }
  func.func @transform_1(%arg0: i32) -> (i32, i32) {
    %c0_i32 = arith.constant 0 : i32
    %c0_i32_0 = arith.constant 0 : i32
    %c0_i32_1 = arith.constant 0 : i32
    return %c0_i32, %c0_i32_0 : i32, i32
  }
  func.func @transform_2(%arg0: i32) -> (i32, i32) {
    %c0_i32 = arith.constant 0 : i32
    %c0_i32_0 = arith.constant 0 : i32
    return %arg0, %c0_i32 : i32, i32
  }
}

</mosaic_0001>

<llo_original>
// kernel: tpu_custom_call.1
$region0: #{tpu_custom_call.1}
  #allocation0 [shape = 'u32[]', space=smem, size = 0x4, offset = 0x4, fixed_abs, tag = 'smem constant byte address 0x4 - core index']
  #allocation1 [shape = 'u32[144,128]{1,0:T(1,128)}', space=vmem, size = 0x12000, scoped, tag = 'internal scratch']
  %s0 = inlined_call_operand.hbm [shape: f32[1,2176], index: 0, kind: input, shape index: {}]
  %s1 = inlined_call_operand.hbm [shape: f32[8,2176], index: 1, kind: input, shape index: {}]
  %s2 = inlined_call_operand.hbm [shape: f32[1,2176], index: 2, kind: output, shape index: {}]
  %s3 = sld [smem:[#allocation0]]
  $region26: #{tpu_custom_call.1} parent=0
    _
  %s5 = ssub.s32 1, %s3
  %s6 = scalar_select 0, %s5, %s3
  $region1: #{tpu_custom_call.1} parent=0
    #allocation2 [shape = 'u8[8704]{0}', space=vmem, size = 0x2400, scoped, tag = 'input window, operand 0, single buffered']
    #allocation3 [shape = 's32[1]{0}', space=sflag, size = 0x4, scoped, tag = 'scoped memory for tpu_custom_call.1']
    #allocation4 [shape = 's32[1]{0}', space=sflag, size = 0x4, scoped, tag = 'scoped memory for tpu_custom_call.1']
    #allocation5 [shape = 'u8[69632]{0}', space=vmem, size = 0x11000, scoped, tag = 'input window, operand 1, single buffered']
    #allocation6 [shape = 's32[1]{0}', space=sflag, size = 0x4, scoped, tag = 'scoped memory for tpu_custom_call.1']
    #allocation7 [shape = 'u8[8704]{0}', space=vmem, size = 0x2400, scoped, tag = 'output window, operand 0, single buffered']
    %7 = vsyncpa [#allocation3], 0
    %8 = vsyncpa [#allocation6], 0
    %9 = vsyncpa [#allocation4], 0
    // Predicated region
    $region2: #{tpu_custom_call.1} parent=1 // pred_check
      _
    $region3: #{tpu_custom_call.1} parent=1 // pred_check_branch
      %11 = sbr.rel (0) target = $region5
    $region4: #{tpu_custom_call.1} parent=1 // pred_region
      %s13 = ssub.s32 272, 272
      %14 = vsyncadd [#allocation3], %s13
      %s16 = sshll.u32 [#allocation2], 4
      %s17 = int_to_ptr.vmem [resolvable:$true] %s16
      %19 = dma.hbm_to_vmem [thread:$0]  %s0, 272, %s17, [#allocation3]
    $region5: #{tpu_custom_call.1} parent=1 // pred_fallthru
      _
    // Predicated region
    $region6: #{tpu_custom_call.1} parent=1 // pred_check
      _
    $region7: #{tpu_custom_call.1} parent=1 // pred_check_branch
      %21 = sbr.rel (0) target = $region9
    $region8: #{tpu_custom_call.1} parent=1 // pred_region
      %s23 = ssub.s32 2176, 2176
      %24 = vsyncadd [#allocation6], %s23
      %s26 = sshll.u32 [#allocation5], 4
      %s27 = int_to_ptr.vmem [resolvable:$true] %s26
      %29 = dma.hbm_to_vmem [thread:$0]  %s1, 2176, %s27, [#allocation6]
    $region9: #{tpu_custom_call.1} parent=1 // pred_fallthru
      _
    // Predicated region
    $region10: #{tpu_custom_call.1} parent=1 // pred_check
      _
    $region11: #{tpu_custom_call.1} parent=1 // pred_check_branch
      %31 = sbr.rel (0) target = $region13
    $region12: #{tpu_custom_call.1} parent=1 // pred_region
      %32 = dma.done [#allocation3], 272
    $region13: #{tpu_custom_call.1} parent=1 // pred_fallthru
      _
    // Predicated region
    $region14: #{tpu_custom_call.1} parent=1 // pred_check
      _
    $region15: #{tpu_custom_call.1} parent=1 // pred_check_branch
      %34 = sbr.rel (0) target = $region17
    $region16: #{tpu_custom_call.1} parent=1 // pred_region
      %35 = dma.done [#allocation6], 2176
    $region17: #{tpu_custom_call.1} parent=1 // pred_fallthru
      _
    %v36 = vld [vmem:[#allocation2] sm:$0xff]
    %v37 = vld [vmem:[#allocation2 + $0x8] sm:$0xff]
    %v38 = vld [vmem:[#allocation2 + $0x10] sm:$0x1]
    %v39 = vld [vmem:[#allocation5] ss:$8 sm:$0xf]
    %v40 = vld [vmem:[#allocation5] ss:$8 sm:$0xf0]
    %v41 = vor.u32 %v39, %v40
    %s42 = scalar_lea.vmem [#allocation5], 64
    %v43 = vld [vmem:[%s42] ss:$8 sm:$0xf]
    %v44 = vld [vmem:[%s42] ss:$8 sm:$0xf0]
    %v45 = vor.u32 %v43, %v44
    %s46 = scalar_lea.vmem [#allocation5], 128
    %v47 = vld [vmem:[%s46] ss:$8 sm:$0x1]
    %v48 = vmul.f32 %v36, %v41
    %v49 = vmul.f32 %v37, %v45
    %v50 = vmul.f32 %v38, %v47
    %51 = vst [vmem:[#allocation7] sm:$0xff] %v48
    %52 = vst [vmem:[#allocation7 + $0x8] sm:$0xff] %v49
    %v53 = vlaneseq
    %vm54 = vcmp.ge.s32.totalorder %v53, 0
    %vm55 = vcmp.lt.s32.totalorder %v53, 128
    %vm56 = vmand %vm54, %vm55
    %57 = vst.msk [vmem:[#allocation7 + $0x10] sm:$0x1] %vm56, %v50
    // Predicated region
    $region18: #{tpu_custom_call.1} parent=1 // pred_check
      _
    $region19: #{tpu_custom_call.1} parent=1 // pred_check_branch
      %59 = sbr.rel (0) target = $region21
    $region20: #{tpu_custom_call.1} parent=1 // pred_region
      %s61 = ssub.s32 272, 272
      %62 = vsyncadd [#allocation4], %s61
      %s64 = sshll.u32 [#allocation7], 4
      %s65 = int_to_ptr.vmem [resolvable:$true] %s64
      %67 = dma.vmem_to_hbm [thread:$0]  %s65, 272, %s2, [#allocation4]
    $region21: #{tpu_custom_call.1} parent=1 // pred_fallthru
      _
    // Predicated region
    $region22: #{tpu_custom_call.1} parent=1 // pred_check
      _
    $region23: #{tpu_custom_call.1} parent=1 // pred_check_branch
      %69 = sbr.rel (0) target = $region25
    $region24: #{tpu_custom_call.1} parent=1 // pred_region
      %70 = dma.done [#allocation4], 272
    $region25: #{tpu_custom_call.1} parent=1 // pred_fallthru
      _
    %71 = vsyncpa [#allocation3], 1
    %72 = vsyncpa [#allocation6], 1
    %73 = vsyncpa [#allocation4], 1

</llo_original>
